<compile_context>
chip_gen: v7x
topology: tpu7x:2x2x1
jax: 0.10.0
libtpu: 0.0.40
codegen_flags: <defaults>
</compile_context>

<pallas_src>
import jax
import jax.numpy as jnp
from jax.experimental import pallas as pl
from jax.experimental.pallas import tpu as pltpu


def _cdiv(a: int, b: int) -> int:
    return -(-a // b)


def _round_up(v: int, m: int) -> int:
    return _cdiv(v, m) * m


def _odefunc_kernel(x_ref, w_ref, b_ref, o_ref):
    # x_ref: (TILE_N, D) row tile of states (streamed, double-buffered)
    # w_ref: (D, D)      transposed weight [in, out], VMEM-resident (index (0,0))
    # b_ref: (1, D)      bias (f32), VMEM-resident
    # o_ref: (TILE_N, D) output tile
    x = x_ref[...].astype(w_ref.dtype)  # in-kernel operand cast (VPU); no-op for f32
    y = jnp.dot(x, w_ref[...], preferred_element_type=jnp.float32)
    y = y + b_ref[...]                  # f32 bias add, broadcast over rows
    o_ref[...] = jnp.tanh(y).astype(o_ref.dtype)


def prepare_odefunc_params(w, b, *, matmul_dtype=jnp.bfloat16):
    """One-time parameter prep. `w` is PyTorch-layout (out, in); `b` is (out,).

    Call once per ODE solve and reuse the result for every RK-stage /
    solver-step evaluation so the per-call path does no parameter work.
    bf16 weights (default) halve the resident weight's VMEM footprint and its
    one-time DMA on every TPU generation; pass matmul_dtype=jnp.float32 (or
    None) for full-precision MXU operands.
    """
    out_d, in_d = w.shape
    assert out_d == in_d and b.shape == (out_d,)
    w_t = jnp.asarray(w).T                       # (in, out): kernel computes x @ w_t
    if matmul_dtype is not None:
        w_t = w_t.astype(matmul_dtype)
    b2 = jnp.asarray(b, jnp.float32).reshape(1, out_d)
    return w_t, b2


def odefunc_forward(t, x, w_t, b2, *, tile_n=512, vmem_budget_bytes=12 << 20):
    """tanh(x @ w_t + b). `t` is ignored (matches PyTorch ODEFunc.forward).

    x:   (N, D)  batch of states (f32 or bf16)
    w_t: (D, D)  prepared transposed weight (see prepare_odefunc_params)
    b2:  (1, D)  prepared f32 bias
    """
    del t
    N, D = x.shape
    assert w_t.shape == (D, D) and b2.shape == (1, D)
    out_dtype = x.dtype
    itemsize = jnp.dtype(x.dtype).itemsize

    # Sublane packing multiple of the HBM-resident state dtype.
    sublane = {4: 8, 2: 16, 1: 32}.get(itemsize, 8)

    # --- Tile sizing -------------------------------------------------------
    # grid*tile ~= N (no round-up waste); even tile count when >1 so the
    # "parallel" row-tile axis splits evenly across v7x's two TensorCores.
    steps = max(1, _cdiv(N, max(tile_n, sublane)))
    if steps > 1 and steps % 2 == 1:
        steps += 1
    tile = max(sublane, _round_up(_cdiv(N, steps), sublane))

    # --- VMEM accounting ---------------------------------------------------
    # Double-buffered x/o tiles + (double-buffered) resident W + bias.  Cap the
    # row tile so we stay under the smallest scoped-VMEM default (v5e: 16 MiB,
    # v6e/v7x: 32 MiB) with headroom -> no vmem_limit_bytes needed anywhere.
    w_bytes = 2 * D * D * jnp.dtype(w_t.dtype).itemsize + 2 * D * 4
    def _stream_bytes(rows):
        return 4 * rows * D * itemsize          # 2 bufs x (x tile + o tile)
    while tile > sublane and w_bytes + _stream_bytes(tile) > vmem_budget_bytes:
        tile = max(sublane, (tile // 2 // sublane) * sublane)
    grid = _cdiv(N, tile)                       # ragged last tile handled by Pallas

    return pl.pallas_call(
        _odefunc_kernel,
        out_shape=jax.ShapeDtypeStruct((N, D), out_dtype),
        grid=(grid,),
        in_specs=[
            pl.BlockSpec((tile, D), lambda i: (i, 0)),  # x: streamed row tiles
            pl.BlockSpec((D, D), lambda i: (0, 0)),     # W: VMEM-resident across tiles
            pl.BlockSpec((1, D), lambda i: (0, 0)),     # b: VMEM-resident
        ],
        out_specs=pl.BlockSpec((tile, D), lambda i: (i, 0)),
        compiler_params=pltpu.CompilerParams(
            # Independent row tiles -> shard across TensorCores on v7x
            # (measured-neutral on single-TC v5e/v6e).
            dimension_semantics=("parallel",),
        ),
    )(x, w_t, b2)


def _reference(x, w, b):
    return jnp.tanh(x @ w.T + b)


if __name__ == "__main__":
    hidden_dim = 32
    D = hidden_dim * 2            # Linear(hidden_dim*2, hidden_dim*2)
    N = 8                         # small batch of ODE states

    key = jax.random.PRNGKey(0)
    kx, kw, kb = jax.random.split(key, 3)

    # Deterministic synthetic parameters (PyTorch-like uniform init scale).
    bound = 1.0 / (D ** 0.5)
    w = jax.random.uniform(kw, (D, D), jnp.float32, -bound, bound)   # PyTorch (out, in)
    b = jax.random.uniform(kb, (D,), jnp.float32, -bound, bound)
    x = jax.random.normal(kx, (N, D), jnp.float32)
    t = jnp.float32(0.0)          # unused, mirrors the ODE-solver time argument

    # 1) Real ODEFunc shape (N=8, D=64), f32 MXU operands, strict tolerance.
    w32, b2 = prepare_odefunc_params(w, b, matmul_dtype=jnp.float32)
    out = jax.block_until_ready(odefunc_forward(t, x, w32, b2))
    assert out.shape == (N, D)
    assert jnp.allclose(out, _reference(x, w, b), atol=1e-5, rtol=1e-5)

    # 2) Larger ragged batch: multi-tile grid with an even tile count and a
    #    ragged last tile (no wrapper-side padding / slicing).
    x_big = jax.random.normal(jax.random.fold_in(kx, 1), (1030, D), jnp.float32)
    out_big = jax.block_until_ready(odefunc_forward(t, x_big, w32, b2, tile_n=512))
    assert out_big.shape == x_big.shape
    assert jnp.allclose(out_big, _reference(x_big, w, b), atol=1e-5, rtol=1e-5)

    # 3) Default bf16 MXU-operand path (weights pre-cast once; x cast
    #    in-kernel; f32 accumulate + bias + tanh keeps accuracy).
    wbf, b2bf = prepare_odefunc_params(w, b)   # matmul_dtype=bfloat16 default
    out_bf = jax.block_until_ready(odefunc_forward(t, x_big, wbf, b2bf, tile_n=512))
    assert jnp.allclose(out_bf, _reference(x_big, w, b), atol=2e-2, rtol=2e-2)

    print("KERNEL_OK")
</pallas_src>

<mosaic_0001>
module attributes {stable_mosaic.version = 11 : i64} {
  func.func @_odefunc_kernel(%arg0: i32, %arg1: memref<8x64xf32, #tpu.memory_space<vmem>>, %arg2: memref<64x64xf32, #tpu.memory_space<vmem>>, %arg3: memref<1x64xf32, #tpu.memory_space<vmem>>, %arg4: memref<8x64xf32, #tpu.memory_space<vmem>>) attributes {dimension_semantics = [#tpu.dimension_semantics<parallel>], iteration_bounds = array<i64: 1>, scalar_prefetch = 0 : i64, scratch_operands = 0 : i64, tpu.core_type = #tpu.core_type<tc>, window_params = [{transform_indices = @transform_0, window_bounds = array<i64: 8, 64>}, {pipeline_mode = #tpu.pipeline_mode<synchronous>, transform_indices = @transform_1, window_bounds = array<i64: 64, 64>}, {pipeline_mode = #tpu.pipeline_mode<synchronous>, transform_indices = @transform_2, window_bounds = array<i64: 1, 64>}, {transform_indices = @transform_3, window_bounds = array<i64: 8, 64>}]} {
    %c0 = arith.constant 0 : index
    %c0_0 = arith.constant 0 : index
    %0 = vector.load %arg1[%c0, %c0_0] : memref<8x64xf32, #tpu.memory_space<vmem>>, vector<8x64xf32>
    %c0_1 = arith.constant 0 : index
    %c0_2 = arith.constant 0 : index
    %1 = vector.load %arg2[%c0_1, %c0_2] : memref<64x64xf32, #tpu.memory_space<vmem>>, vector<64x64xf32>
    %cst = arith.constant dense<0.000000e+00> : vector<8x64xf32>
    %2 = tpu.matmul %0, %1, %cst {dimension_numbers = #tpu.dot_dimension_numbers<[1], [0], [0], [1], [0, 0, 1, 1], [], []>} : vector<8x64xf32>, vector<64x64xf32>, vector<8x64xf32> -> vector<8x64xf32>
    %c0_3 = arith.constant 0 : index
    %c0_4 = arith.constant 0 : index
    %3 = vector.load %arg3[%c0_3, %c0_4] : memref<1x64xf32, #tpu.memory_space<vmem>>, vector<1x64xf32>
    %4 = vector.broadcast %3 : vector<1x64xf32> to vector<8x64xf32>
    %5 = arith.addf %2, %4 : vector<8x64xf32>
    %6 = math.tanh %5 : vector<8x64xf32>
    %c0_5 = arith.constant 0 : index
    %c0_6 = arith.constant 0 : index
    %7 = vector.load %arg4[%c0_5, %c0_6] : memref<8x64xf32, #tpu.memory_space<vmem>>, vector<8x64xf32>
    tpu.vector_store %arg4[%c0_5, %c0_6], %6 {strides = array<i32>} : memref<8x64xf32, #tpu.memory_space<vmem>>, vector<8x64xf32>,
    return
  }
  func.func @transform_0(%arg0: i32) -> (i32, i32) {
    %c0_i32 = arith.constant 0 : i32
    %c0_i32_0 = arith.constant 0 : i32
    return %arg0, %c0_i32 : i32, i32
  }
  func.func @transform_1(%arg0: i32) -> (i32, i32) {
    %c0_i32 = arith.constant 0 : i32
    %c0_i32_0 = arith.constant 0 : i32
    %c0_i32_1 = arith.constant 0 : i32
    return %c0_i32, %c0_i32_0 : i32, i32
  }
  func.func @transform_2(%arg0: i32) -> (i32, i32) {
    %c0_i32 = arith.constant 0 : i32
    %c0_i32_0 = arith.constant 0 : i32
    %c0_i32_1 = arith.constant 0 : i32
    return %c0_i32, %c0_i32_0 : i32, i32
  }
  func.func @transform_3(%arg0: i32) -> (i32, i32) {
    %c0_i32 = arith.constant 0 : i32
    %c0_i32_0 = arith.constant 0 : i32
    return %arg0, %c0_i32 : i32, i32
  }
}

</mosaic_0001>

<llo_original>
// kernel: tpu_custom_call.1
$region0: #{tpu_custom_call.1}
  #allocation0 [shape = 'u32[]', space=smem, size = 0x4, offset = 0x4, fixed_abs, tag = 'smem constant byte address 0x4 - core index']
  #allocation1 [shape = 'u32[144,128]{1,0:T(1,128)}', space=vmem, size = 0x12000, scoped, tag = 'internal scratch']
  %s0 = inlined_call_operand.hbm [shape: f32[8,64], index: 0, kind: input, shape index: {}]
  %s1 = inlined_call_operand.hbm [shape: f32[64,64], index: 1, kind: input, shape index: {}]
  %s2 = inlined_call_operand.vmem [shape: f32[1,64], index: 2, kind: input, shape index: {}]
  %s3 = inlined_call_operand.hbm [shape: f32[8,64], index: 3, kind: output, shape index: {}]
  %s4 = sld [smem:[#allocation0]]
  $region30: #{tpu_custom_call.1} parent=0
    _
  %s6 = ssub.s32 1, %s4
  %s7 = scalar_select 0, %s6, %s4
  $region1: #{tpu_custom_call.1} parent=0
    #allocation2 [shape = 'u8[4096]{0}', space=vmem, size = 0x1000, scoped, tag = 'input window, operand 0, single buffered']
    #allocation3 [shape = 's32[1]{0}', space=sflag, size = 0x4, scoped, tag = 'scoped memory for tpu_custom_call.1']
    #allocation4 [shape = 's32[1]{0}', space=sflag, size = 0x4, scoped, tag = 'scoped memory for tpu_custom_call.1']
    #allocation5 [shape = 'u8[32768]{0}', space=vmem, size = 0x8000, scoped, tag = 'input window, operand 1, single buffered']
    #allocation6 [shape = 's32[1]{0}', space=sflag, size = 0x4, scoped, tag = 'scoped memory for tpu_custom_call.1']
    #allocation7 [shape = 'u8[4096]{0}', space=vmem, size = 0x1000, scoped, tag = 'output window, operand 0, single buffered']
    %8 = vsyncpa [#allocation3], 0
    %9 = vsyncpa [#allocation6], 0
    %10 = vsyncpa [#allocation4], 0
    // Predicated region
    $region2: #{tpu_custom_call.1} parent=1 // pred_check
      _
    $region3: #{tpu_custom_call.1} parent=1 // pred_check_branch
      %12 = sbr.rel (0) target = $region5
    $region4: #{tpu_custom_call.1} parent=1 // pred_region
      %s14 = ssub.s32 128, 128
      %15 = vsyncadd [#allocation3], %s14
      %s17 = sshll.u32 [#allocation2], 4
      %s18 = int_to_ptr.vmem [resolvable:$true] %s17
      %20 = dma.hbm_to_vmem [thread:$0]  %s0, 128, %s18, [#allocation3]
    $region5: #{tpu_custom_call.1} parent=1 // pred_fallthru
      _
    // Predicated region
    $region6: #{tpu_custom_call.1} parent=1 // pred_check
      _
    $region7: #{tpu_custom_call.1} parent=1 // pred_check_branch
      %22 = sbr.rel (0) target = $region9
    $region8: #{tpu_custom_call.1} parent=1 // pred_region
      %s24 = ssub.s32 1024, 1024
      %25 = vsyncadd [#allocation6], %s24
      %s26 = sshll.u32 [#allocation5], 4
      %s27 = int_to_ptr.vmem [resolvable:$true] %s26
      %32 = dma.hbm_to_vmem [thread:$0]  %s1, 1024, %s27, [#allocation6], 128, 128, 8
    $region9: #{tpu_custom_call.1} parent=1 // pred_fallthru
      _
    // Predicated region
    $region10: #{tpu_custom_call.1} parent=1 // pred_check
      _
    $region11: #{tpu_custom_call.1} parent=1 // pred_check_branch
      %34 = sbr.rel (0) target = $region13
    $region12: #{tpu_custom_call.1} parent=1 // pred_region
      _
    $region13: #{tpu_custom_call.1} parent=1 // pred_fallthru
      _
    // Predicated region
    $region14: #{tpu_custom_call.1} parent=1 // pred_check
      _
    $region15: #{tpu_custom_call.1} parent=1 // pred_check_branch
      %36 = sbr.rel (0) target = $region17
    $region16: #{tpu_custom_call.1} parent=1 // pred_region
      %37 = dma.done [#allocation3], 128
    $region17: #{tpu_custom_call.1} parent=1 // pred_fallthru
      _
    // Predicated region
    $region18: #{tpu_custom_call.1} parent=1 // pred_check
      _
    $region19: #{tpu_custom_call.1} parent=1 // pred_check_branch
      %39 = sbr.rel (0) target = $region21
    $region20: #{tpu_custom_call.1} parent=1 // pred_region
      %40 = dma.done [#allocation6], 1024
    $region21: #{tpu_custom_call.1} parent=1 // pred_fallthru
      _
    %v41 = vld [vmem:[#allocation2] sm:$0xff]
    %v42 = vld [vmem:[#allocation5] sm:$0xff]
    %v43 = vld [vmem:[#allocation5 + $0x8] sm:$0xff]
    %v44 = vld [vmem:[#allocation5 + $0x10] sm:$0xff]
    %v45 = vld [vmem:[#allocation5 + $0x18] sm:$0xff]
    %v46 = vld [vmem:[#allocation5 + $0x20] sm:$0xff]
    %v47 = vld [vmem:[#allocation5 + $0x28] sm:$0xff]
    %v48 = vld [vmem:[#allocation5 + $0x30] sm:$0xff]
    %v49 = vld [vmem:[#allocation5 + $0x38] sm:$0xff]
    %v50 = vld [vmem:[%s2] sm:$0x1]
    %v52 = vlaneseq
    %v53 = vshrl.u32 %v52, 7
    %v54 = vsub.s32 0, %v53
    %v55 = vrot.slane %v50, %v54
    %vm57 = vcmask 523264
    %v59 = vsel %vm57, %v41, 0
    %61 = vmatprep.subr.mxu0 0.0
    %62 = vmatpush1.msra.mxu0 %v42
    %63 = vmatprep.subr.mxu0 0.0
    %64 = vmatpush1.msra.mxu0 %v43
    %65 = vmatprep.subr.mxu0 0.0
    %66 = vmatpush1.msra.mxu0 %v44
    %67 = vmatprep.subr.mxu0 0.0
    %68 = vmatpush1.msra.mxu0 %v45
    %69 = vmatprep.subr.mxu0 0.0
    %70 = vmatpush1.msra.mxu0 %v46
    %71 = vmatprep.subr.mxu0 0.0
    %72 = vmatpush1.msra.mxu0 %v47
    %73 = vmatprep.subr.mxu0 0.0
    %74 = vmatpush1.msra.mxu0 %v48
    %75 = vmatprep.subr.mxu0 0.0
    %76 = vmatpush1.msra.mxu0 %v49
    %77 = vmatprep.subr.mxu0 0.0
    %78 = vmatpush1.msra.mxu0 0.0
    %79 = vmatprep.subr.mxu0 0.0
    %80 = vmatpush1.msra.mxu0 0.0
    %81 = vmatprep.subr.mxu0 0.0
    %82 = vmatpush1.msra.mxu0 0.0
    %83 = vmatprep.subr.mxu0 0.0
    %84 = vmatpush1.msra.mxu0 0.0
    %85 = vmatprep.subr.mxu0 0.0
    %86 = vmatpush1.msra.mxu0 0.0
    %87 = vmatprep.subr.mxu0 0.0
    %88 = vmatpush1.msra.mxu0 0.0
    %89 = vmatprep.subr.mxu0 0.0
    %90 = vmatpush1.msra.mxu0 0.0
    %91 = vmatprep.subr.mxu0 0.0
    %92 = vmatpush1.msra.mxu0 0.0
    %93 = vmatprep.subr.mxu0 0.0
    %94 = vmatpush1.msra.mxu0 0.0
    %95 = vmatprep.subr.mxu0 0.0
    %96 = vmatpush1.msra.mxu0 0.0
    %97 = vmatprep.subr.mxu0 0.0
    %98 = vmatpush1.msra.mxu0 0.0
    %99 = vmatprep.subr.mxu0 0.0
    %100 = vmatpush1.msra.mxu0 0.0
    %101 = vmatprep.subr.mxu0 0.0
    %102 = vmatpush1.msra.mxu0 0.0
    %103 = vmatprep.subr.mxu0 0.0
    %104 = vmatpush1.msra.mxu0 0.0
    %105 = vmatprep.subr.mxu0 0.0
    %106 = vmatpush1.msra.mxu0 0.0
    %107 = vmatprep.subr.mxu0 0.0
    %108 = vmatpush1.msra.mxu0 0.0
    %109 = vmatprep.subr.mxu0 0.0
    %110 = vmatpush1.msra.mxu0 0.0
    %111 = vmatprep.subr.mxu0 0.0
    %112 = vmatpush1.msra.mxu0 0.0
    %113 = vmatprep.subr.mxu0 0.0
    %114 = vmatpush1.msra.mxu0 0.0
    %115 = vmatprep.subr.mxu0 0.0
    %116 = vmatpush1.msra.mxu0 0.0
    %117 = vmatprep.subr.mxu0 0.0
    %118 = vmatpush1.msra.mxu0 0.0
    %119 = vmatprep.subr.mxu0 0.0
    %120 = vmatpush1.msra.mxu0 0.0
    %121 = vmatprep.subr.mxu0 0.0
    %122 = vmatpush1.msra.mxu0 0.0
    %123 = vmatprep.subr.mxu0 0.0
    %124 = vmatpush1.msra.mxu0 0.0
    %125 = vmatprep.mubr.f32.mxu0 0.0
    %126 = vmatmul.mubr.f32.gmra.mrb[0].mxu0 %v59
    %v127 = vpop.f32.mrb[0].mxu0
    %v128 = vadd.f32 %v55, %v127
    %v129 = vpop.f32.mrb[0].mxu0
    %130 = vdwg.mxu0
    %v131 = vtanh.pop %v128
    %132 = vst.msk [vmem:[#allocation7] sm:$0xff] %vm57, %v131
    // Predicated region
    $region22: #{tpu_custom_call.1} parent=1 // pred_check
      _
    $region23: #{tpu_custom_call.1} parent=1 // pred_check_branch
      %134 = sbr.rel (0) target = $region25
    $region24: #{tpu_custom_call.1} parent=1 // pred_region
      %s136 = ssub.s32 128, 128
      %137 = vsyncadd [#allocation4], %s136
      %s139 = sshll.u32 [#allocation7], 4
      %s140 = int_to_ptr.vmem [resolvable:$true] %s139
      %142 = dma.vmem_to_hbm [thread:$0]  %s140, 128, %s3, [#allocation4]
    $region25: #{tpu_custom_call.1} parent=1 // pred_fallthru
      _
    // Predicated region
    $region26: #{tpu_custom_call.1} parent=1 // pred_check
      _
    $region27: #{tpu_custom_call.1} parent=1 // pred_check_branch
      %144 = sbr.rel (0) target = $region29
    $region28: #{tpu_custom_call.1} parent=1 // pred_region
      %145 = dma.done [#allocation4], 128
    $region29: #{tpu_custom_call.1} parent=1 // pred_fallthru
      _
    %146 = vsyncpa [#allocation3], 1
    %147 = vsyncpa [#allocation6], 1
    %148 = vsyncpa [#allocation4], 1

</llo_original>
